<compile_context>
chip_gen: v6e
topology: v6e:2x2x1
jax: 0.10.0
libtpu: 0.0.40
codegen_flags: <defaults>
</compile_context>

<pallas_src>
import jax
import jax.numpy as jnp
from jax.experimental import pallas as pl
from jax.experimental.pallas import tpu as pltpu

EPS = 1e-5


def _round_up(x, m):
    return (x + m - 1) // m * m


# ----------------------------------------------------------------------------- kernels
def _deconv_stats_kernel(g_ref, w_ref, y_ref, stats_ref):
    """One point tile: y = g @ w (single wide contraction) + BN partial stats.

    g_ref    : [tile_n, Dp]   bf16  flattened (K*inc, zero-padded) gathered feats
    w_ref    : [Dp, Cp]       bf16  flattened weight, VMEM-resident across the grid
    y_ref    : [tile_n, Cp]   f32   deconv output tile
    stats_ref: [1, 8, Cp]     f32   sublane 0 = per-tile sum(y), sublane 1 = sum(y*y)
    """
    y = jnp.dot(g_ref[...], w_ref[...], preferred_element_type=jnp.float32)
    y_ref[...] = y

    s = jnp.sum(y, axis=0, keepdims=True)         # [1, Cp]
    ss = jnp.sum(y * y, axis=0, keepdims=True)    # [1, Cp]
    row = jax.lax.broadcasted_iota(jnp.int32, (8, y.shape[1]), 0)
    stats = jnp.where(row == 0, s, jnp.where(row == 1, ss, 0.0))
    stats_ref[...] = stats[None]


def _bn_relu_kernel(y_ref, scale_ref, bias_ref, o_ref):
    """Fused BatchNorm (precomputed per-channel scale/bias) + ReLU: one FMA + max."""
    o_ref[...] = jnp.maximum(y_ref[...] * scale_ref[...] + bias_ref[...],
                             0.0).astype(o_ref.dtype)


# ----------------------------------------------------------------------------- wrappers
def sparse_deconv_pallas(gathered_flat, weight_flat, *, tile_n=256):
    """gathered_flat: [Np, Dp], weight_flat: [Dp, Cp]  (Np % tile_n == 0,
    Dp/Cp multiples of 128).  Returns (y [Np, Cp] f32, stats [nt, 8, Cp] f32)."""
    Np, Dp = gathered_flat.shape
    Dp2, Cp = weight_flat.shape
    assert Dp == Dp2 and Np % tile_n == 0 and Dp % 128 == 0 and Cp % 128 == 0
    num_tiles = Np // tile_n

    g_item = jnp.dtype(gathered_flat.dtype).itemsize
    w_item = jnp.dtype(weight_flat.dtype).itemsize
    vmem_need = (2 * tile_n * Dp * g_item        # double-buffered gather tile
                 + Dp * Cp * w_item              # resident weight
                 + 2 * tile_n * Cp * 4           # double-buffered y tile
                 + 2 * 8 * Cp * 4)               # stats tile
    vmem_limit = int(min(max(2 * vmem_need, 16 * 1024 * 1024), 64 * 1024 * 1024))

    return pl.pallas_call(
        _deconv_stats_kernel,
        out_shape=(
            jax.ShapeDtypeStruct((Np, Cp), jnp.float32),
            jax.ShapeDtypeStruct((num_tiles, 8, Cp), jnp.float32),
        ),
        grid_spec=pltpu.PrefetchScalarGridSpec(
            num_scalar_prefetch=0,
            grid=(num_tiles,),
            in_specs=[
                pl.BlockSpec((tile_n, Dp), lambda n: (n, 0)),
                pl.BlockSpec((Dp, Cp), lambda n: (0, 0)),   # weight resident: DMA once
            ],
            out_specs=[
                pl.BlockSpec((tile_n, Cp), lambda n: (n, 0)),
                pl.BlockSpec((1, 8, Cp), lambda n: (n, 0, 0)),
            ],
        ),
        compiler_params=pltpu.CompilerParams(
            dimension_semantics=("parallel",),
            vmem_limit_bytes=vmem_limit),
    )(gathered_flat, weight_flat)


def bn_relu_pallas(y, scale, bias, *, tile_n=256):
    """y: [Np, Cp] f32; scale/bias: [Cp] precomputed per-channel affine."""
    Np, Cp = y.shape
    assert Np % tile_n == 0 and Cp % 128 == 0
    scale2 = scale.reshape(1, Cp).astype(jnp.float32)
    bias2 = bias.reshape(1, Cp).astype(jnp.float32)
    vec_spec = pl.BlockSpec((1, Cp), lambda n: (0, 0))

    return pl.pallas_call(
        _bn_relu_kernel,
        out_shape=jax.ShapeDtypeStruct((Np, Cp), jnp.float32),
        grid_spec=pltpu.PrefetchScalarGridSpec(
            num_scalar_prefetch=0,
            grid=(Np // tile_n,),
            in_specs=[
                pl.BlockSpec((tile_n, Cp), lambda n: (n, 0)),
                vec_spec, vec_spec,
            ],
            out_specs=pl.BlockSpec((tile_n, Cp), lambda n: (n, 0)),
        ),
        compiler_params=pltpu.CompilerParams(dimension_semantics=("parallel",)),
    )(y, scale2, bias2)


# ----------------------------------------------------------------------------- glue
def make_kernel_offsets(ks):
    r = jnp.arange(ks) - (ks - 1) // 2
    gx, gy, gz = jnp.meshgrid(r, r, r, indexing="ij")
    return jnp.stack([gx.ravel(), gy.ravel(), gz.ravel()], axis=-1).astype(jnp.int32)


def build_neighbor_index(coords, offsets):
    """For each output point / kernel offset: index of the input voxel at
    coord(p) - offset_k within the same batch, or -1 if absent.  O(K*N^2)
    brute force (coordinate-hash glue; fine at demo scale)."""
    b = coords[:, 0]
    xyz = coords[:, 1:]
    maps = []
    for k in range(offsets.shape[0]):
        q = xyz - offsets[k]                                           # [N, 3]
        eq = jnp.all(q[:, None, :] == xyz[None, :, :], axis=-1)        # [N, N]
        eq = eq & (b[:, None] == b[None, :])
        has = jnp.any(eq, axis=-1)
        j = jnp.argmax(eq, axis=-1)
        maps.append(jnp.where(has, j, -1))
    return jnp.stack(maps, axis=0).astype(jnp.int32)                   # [K, N]


def basic_deconvolution_block(feats, coords, weight, gamma, beta, ks=3, stride=1,
                              *, tile_n=256, compute_dtype=jnp.bfloat16):
    assert stride == 1, "only stride=1 transposed path implemented (see TODO above)"
    N, inc = feats.shape
    K, _, outc = weight.shape

    offsets = make_kernel_offsets(ks)
    nbr = build_neighbor_index(coords, offsets)                        # [K, N]
    safe = jnp.maximum(nbr, 0)
    gathered = feats[safe]                                             # [K, N, inc]
    gathered = jnp.where((nbr >= 0)[..., None], gathered, 0.0)
    # TODO(synk): at real scale (N~1e5, inc>=64) do this gather in-kernel from feats
    # kept in HBM via scalar-prefetched neighbor indices / manual DMA instead of
    # materializing K copies of the feature tensor.

    # Flatten the K-offset reduction into one wide contraction; zero-pad channel
    # axes to 128-multiples (lane-dense, MXU-aligned) and the point axis to tile_n.
    Dp = _round_up(K * inc, 128)
    Cp = _round_up(outc, 128)
    Np = _round_up(N, tile_n)

    g_flat = jnp.transpose(gathered, (1, 0, 2)).reshape(N, K * inc)
    g_flat = jnp.pad(g_flat, ((0, Np - N), (0, Dp - K * inc))).astype(compute_dtype)
    w_flat = weight.reshape(K * inc, outc)
    w_flat = jnp.pad(w_flat, ((0, Dp - K * inc), (0, Cp - outc))).astype(compute_dtype)

    y, stats = sparse_deconv_pallas(g_flat, w_flat, tile_n=tile_n)     # [Np, Cp]

    # BatchNorm1d training-mode batch statistics from the fused per-tile partials.
    # Padded rows / channels contribute exact zeros, so dividing by the true N is exact.
    total = jnp.sum(stats[:, 0, :], axis=0)                            # [Cp]
    total_sq = jnp.sum(stats[:, 1, :], axis=0)                         # [Cp]
    mean = total / N
    var = jnp.maximum(total_sq / N - mean * mean, 0.0)

    gamma_p = jnp.pad(gamma, (0, Cp - outc))
    beta_p = jnp.pad(beta, (0, Cp - outc))
    scale = gamma_p * jax.lax.rsqrt(var + EPS)
    bias = beta_p - mean * scale

    out = bn_relu_pallas(y, scale, bias, tile_n=tile_n)
    return out[:N, :outc]


def reference(feats, coords, weight, gamma, beta, ks=3, compute_dtype=jnp.bfloat16):
    offsets = make_kernel_offsets(ks)
    nbr = build_neighbor_index(coords, offsets)
    safe = jnp.maximum(nbr, 0)
    gathered = jnp.where((nbr >= 0)[..., None], feats[safe], 0.0)
    y = jnp.einsum("kni,kio->no",
                   gathered.astype(compute_dtype), weight.astype(compute_dtype),
                   preferred_element_type=jnp.float32)
    mean = jnp.mean(y, axis=0)
    var = jnp.mean((y - mean[None, :]) ** 2, axis=0)
    yn = (y - mean) * gamma * jax.lax.rsqrt(var + EPS) + beta
    return jnp.maximum(yn, 0.0)


# ----------------------------------------------------------------------------- main
if __name__ == "__main__":
    key = jax.random.PRNGKey(0)
    inc, outc, ks = 4, 8, 3
    K = ks ** 3
    batch, grid_sz, pts_per_batch = 2, 8, 32
    N = batch * pts_per_batch                                          # 64 active voxels

    # Deterministic sparse coordinates: first 32 voxels of an 8x8x8 grid per batch item.
    lin = jnp.arange(pts_per_batch, dtype=jnp.int32)
    x = lin // (grid_sz * grid_sz)
    y_ = (lin // grid_sz) % grid_sz
    z = lin % grid_sz
    coords_one = jnp.stack([x, y_, z], axis=-1)
    coords = jnp.concatenate(
        [jnp.concatenate([jnp.full((pts_per_batch, 1), b, jnp.int32), coords_one], -1)
         for b in range(batch)], axis=0)                               # [N, 4]

    k_f, k_w, k_g, k_b = jax.random.split(key, 4)
    feats = jax.random.normal(k_f, (N, inc), dtype=jnp.float32)
    w_scale = (2.0 / (K * inc)) ** 0.5
    weight = jax.random.normal(k_w, (K, inc, outc), dtype=jnp.float32) * w_scale
    gamma = 1.0 + 0.1 * jax.random.normal(k_g, (outc,), dtype=jnp.float32)
    beta = 0.1 * jax.random.normal(k_b, (outc,), dtype=jnp.float32)

    out = basic_deconvolution_block(feats, coords, weight, gamma, beta, ks=ks, stride=1)
    out = jax.block_until_ready(out)

    ref = reference(feats, coords, weight, gamma, beta, ks=ks)
    assert out.shape == (N, outc)
    err = float(jnp.max(jnp.abs(out - ref)))
    assert err < 2e-3, err

    print("KERNEL_OK")
</pallas_src>

<mosaic_0001>
module attributes {stable_mosaic.version = 11 : i64} {
  func.func @_deconv_stats_kernel(%arg0: i32, %arg1: memref<256x128xbf16, #tpu.memory_space<vmem>>, %arg2: memref<128x128xbf16, #tpu.memory_space<vmem>>, %arg3: memref<256x128xf32, #tpu.memory_space<vmem>>, %arg4: memref<1x8x128xf32, #tpu.memory_space<vmem>>) attributes {dimension_semantics = [#tpu.dimension_semantics<parallel>], iteration_bounds = array<i64: 1>, scalar_prefetch = 0 : i64, scratch_operands = 0 : i64, tpu.core_type = #tpu.core_type<tc>, window_params = [{transform_indices = @transform_0, window_bounds = array<i64: 256, 128>}, {pipeline_mode = #tpu.pipeline_mode<synchronous>, transform_indices = @transform_1, window_bounds = array<i64: 128, 128>}, {transform_indices = @transform_2, window_bounds = array<i64: 256, 128>}, {transform_indices = @transform_3, window_bounds = array<i64: 1, 8, 128>}]} {
    %c0 = arith.constant 0 : index
    %c0_0 = arith.constant 0 : index
    %0 = vector.load %arg1[%c0, %c0_0] : memref<256x128xbf16, #tpu.memory_space<vmem>>, vector<256x128xbf16>
    %c0_1 = arith.constant 0 : index
    %c0_2 = arith.constant 0 : index
    %1 = vector.load %arg2[%c0_1, %c0_2] : memref<128x128xbf16, #tpu.memory_space<vmem>>, vector<128x128xbf16>
    %cst = arith.constant dense<0.000000e+00> : vector<256x128xf32>
    %2 = tpu.matmul %0, %1, %cst {dimension_numbers = #tpu.dot_dimension_numbers<[1], [0], [0], [1], [0, 0, 1, 1], [], []>} : vector<256x128xbf16>, vector<128x128xbf16>, vector<256x128xf32> -> vector<256x128xf32>
    %c0_3 = arith.constant 0 : index
    %c0_4 = arith.constant 0 : index
    %3 = vector.load %arg3[%c0_3, %c0_4] : memref<256x128xf32, #tpu.memory_space<vmem>>, vector<256x128xf32>
    tpu.vector_store %arg3[%c0_3, %c0_4], %2 {strides = array<i32>} : memref<256x128xf32, #tpu.memory_space<vmem>>, vector<256x128xf32>,
    %cst_5 = arith.constant dense<0.000000e+00> : vector<128xf32>
    %4 = vector.multi_reduction <add>, %2, %cst_5 [0] : vector<256x128xf32> to vector<128xf32>
    %5 = vector.shape_cast %4 : vector<128xf32> to vector<1x128xf32>
    %6 = arith.mulf %2, %2 : vector<256x128xf32>
    %cst_6 = arith.constant dense<0.000000e+00> : vector<128xf32>
    %7 = vector.multi_reduction <add>, %6, %cst_6 [0] : vector<256x128xf32> to vector<128xf32>
    %8 = vector.shape_cast %7 : vector<128xf32> to vector<1x128xf32>
    %9 = tpu.iota {dimensions = array<i32: 0>} : vector<8x128xi32>
    %c0_i32 = arith.constant 0 : i32
    %10 = vector.broadcast %c0_i32 : i32 to vector<8x128xi32>
    %11 = arith.cmpi eq, %9, %10 : vector<8x128xi32>
    %c1_i32 = arith.constant 1 : i32
    %12 = vector.broadcast %c1_i32 : i32 to vector<8x128xi32>
    %13 = arith.cmpi eq, %9, %12 : vector<8x128xi32>
    %cst_7 = arith.constant 0.000000e+00 : f32
    %14 = vector.shape_cast %8 : vector<1x128xf32> to vector<1x128xf32>
    %15 = vector.broadcast %14 : vector<1x128xf32> to vector<8x128xf32>
    %16 = vector.broadcast %cst_7 : f32 to vector<8x128xf32>
    %17 = arith.select %13, %15, %16 : vector<8x128xi1>, vector<8x128xf32>
    %18 = vector.shape_cast %5 : vector<1x128xf32> to vector<1x128xf32>
    %19 = vector.broadcast %18 : vector<1x128xf32> to vector<8x128xf32>
    %20 = arith.select %11, %19, %17 : vector<8x128xi1>, vector<8x128xf32>
    %21 = vector.shape_cast %20 : vector<8x128xf32> to vector<1x8x128xf32>
    %c0_8 = arith.constant 0 : index
    %c0_9 = arith.constant 0 : index
    %c0_10 = arith.constant 0 : index
    %22 = vector.load %arg4[%c0_8, %c0_9, %c0_10] : memref<1x8x128xf32, #tpu.memory_space<vmem>>, vector<1x8x128xf32>
    tpu.vector_store %arg4[%c0_8, %c0_9, %c0_10], %21 {strides = array<i32>} : memref<1x8x128xf32, #tpu.memory_space<vmem>>, vector<1x8x128xf32>,
    return
  }
  func.func @transform_0(%arg0: i32) -> (i32, i32) {
    %c0_i32 = arith.constant 0 : i32
    %c0_i32_0 = arith.constant 0 : i32
    return %arg0, %c0_i32 : i32, i32
  }
  func.func @transform_1(%arg0: i32) -> (i32, i32) {
    %c0_i32 = arith.constant 0 : i32
    %c0_i32_0 = arith.constant 0 : i32
    %c0_i32_1 = arith.constant 0 : i32
    return %c0_i32, %c0_i32_0 : i32, i32
  }
  func.func @transform_2(%arg0: i32) -> (i32, i32) {
    %c0_i32 = arith.constant 0 : i32
    %c0_i32_0 = arith.constant 0 : i32
    return %arg0, %c0_i32 : i32, i32
  }
  func.func @transform_3(%arg0: i32) -> (i32, i32, i32) {
    %c0_i32 = arith.constant 0 : i32
    %c0_i32_0 = arith.constant 0 : i32
    %c0_i32_1 = arith.constant 0 : i32
    return %arg0, %c0_i32, %c0_i32_0 : i32, i32, i32
  }
}

</mosaic_0001>

<llo_original>
// kernel: tpu_custom_call.1
$region0: #{tpu_custom_call.1}
  #allocation0 [shape = 'u32[]', space=smem, size = 0x4, offset = 0x4, fixed_abs, tag = 'smem constant byte address 0x4 - core index']
  #allocation1 [shape = 'u32[144,128]{1,0:T(1,128)}', space=vmem, size = 0x12000, scoped, tag = 'internal scratch']
  %s0 = inlined_call_operand.hbm [shape: bf16[256,128], index: 0, kind: input, shape index: {}]
  %s1 = inlined_call_operand.hbm [shape: bf16[128,128], index: 1, kind: input, shape index: {}]
  %s2 = inlined_call_operand.hbm [shape: f32[256,128], index: 2, kind: output, shape index: {0}]
  %s3 = inlined_call_operand.hbm [shape: f32[1,8,128], index: 3, kind: output, shape index: {1}]
  %4 = xla_tuple %s2, %s3
  %s5 = sld [smem:[#allocation0]]
  $region34: #{tpu_custom_call.1} parent=0
    _
  %s7 = ssub.s32 1, %s5
  %s8 = scalar_select 0, %s7, %s5
  $region1: #{tpu_custom_call.1} parent=0
    #allocation2 [shape = 'u8[65536]{0}', space=vmem, size = 0x10000, scoped, tag = 'input window, operand 0, single buffered']
    #allocation3 [shape = 's32[1]{0}', space=sflag, size = 0x4, scoped, tag = 'scoped memory for tpu_custom_call.1']
    #allocation4 [shape = 's32[1]{0}', space=sflag, size = 0x4, scoped, tag = 'scoped memory for tpu_custom_call.1']
    #allocation5 [shape = 'u8[32768]{0}', space=vmem, size = 0x8000, scoped, tag = 'input window, operand 1, single buffered']
    #allocation6 [shape = 's32[1]{0}', space=sflag, size = 0x4, scoped, tag = 'scoped memory for tpu_custom_call.1']
    #allocation7 [shape = 'u8[131072]{0}', space=vmem, size = 0x20000, scoped, tag = 'output window, operand 0, single buffered']
    #allocation8 [shape = 'u8[4096]{0}', space=vmem, size = 0x1000, scoped, tag = 'output window, operand 1, single buffered']
    #allocation9 [shape = 's32[1]{0}', space=sflag, size = 0x4, scoped, tag = 'scoped memory for tpu_custom_call.1']
    %9 = vsyncpa [#allocation3], 0
    %10 = vsyncpa [#allocation6], 0
    %11 = vsyncpa [#allocation4], 0
    %12 = vsyncpa [#allocation9], 0
    // Predicated region
    $region2: #{tpu_custom_call.1} parent=1 // pred_check
      _
    $region3: #{tpu_custom_call.1} parent=1 // pred_check_branch
      %14 = sbr.rel (0) target = $region5
    $region4: #{tpu_custom_call.1} parent=1 // pred_region
      %s16 = ssub.s32 2048, 2048
      %17 = vsyncadd [#allocation3], %s16
      %s18 = sshll.u32 [#allocation2], 4
      %s19 = int_to_ptr.vmem [resolvable:$true] %s18
      %24 = dma.hbm_to_vmem [thread:$0]  %s0, 2048, %s19, [#allocation3], 64, 64, 4
    $region5: #{tpu_custom_call.1} parent=1 // pred_fallthru
      _
    // Predicated region
    $region6: #{tpu_custom_call.1} parent=1 // pred_check
      _
    $region7: #{tpu_custom_call.1} parent=1 // pred_check_branch
      %26 = sbr.rel (0) target = $region9
    $region8: #{tpu_custom_call.1} parent=1 // pred_region
      %s28 = ssub.s32 1024, 1024
      %29 = vsyncadd [#allocation6], %s28
      %s30 = sshll.u32 [#allocation5], 4
      %s31 = int_to_ptr.vmem [resolvable:$true] %s30
      %36 = dma.hbm_to_vmem [thread:$0]  %s1, 1024, %s31, [#allocation6], 64, 64, 4
    $region9: #{tpu_custom_call.1} parent=1 // pred_fallthru
      _
    // Predicated region
    $region10: #{tpu_custom_call.1} parent=1 // pred_check
      _
    $region11: #{tpu_custom_call.1} parent=1 // pred_check_branch
      %38 = sbr.rel (0) target = $region13
    $region12: #{tpu_custom_call.1} parent=1 // pred_region
      %39 = dma.done [#allocation3], 2048
    $region13: #{tpu_custom_call.1} parent=1 // pred_fallthru
      _
    // Predicated region
    $region14: #{tpu_custom_call.1} parent=1 // pred_check
      _
    $region15: #{tpu_custom_call.1} parent=1 // pred_check_branch
      %41 = sbr.rel (0) target = $region17
    $region16: #{tpu_custom_call.1} parent=1 // pred_region
      %42 = dma.done [#allocation6], 1024
    $region17: #{tpu_custom_call.1} parent=1 // pred_fallthru
      _
    %v44 = vld [vmem:[#allocation2] sm:$0xf]
    %v45 = vld [vmem:[#allocation2 + $0x4] sm:$0xf]
    %v46 = vld [vmem:[#allocation2 + $0x8] sm:$0xf]
    %v47 = vld [vmem:[#allocation2 + $0xc] sm:$0xf]
    %v48 = vld [vmem:[#allocation2 + $0x10] sm:$0xf]
    %v49 = vld [vmem:[#allocation2 + $0x14] sm:$0xf]
    %v50 = vld [vmem:[#allocation2 + $0x18] sm:$0xf]
    %v51 = vld [vmem:[#allocation2 + $0x1c] sm:$0xf]
    %v52 = vld [vmem:[#allocation2 + $0x20] sm:$0xf]
    %v53 = vld [vmem:[#allocation2 + $0x24] sm:$0xf]
    %v54 = vld [vmem:[#allocation2 + $0x28] sm:$0xf]
    %v55 = vld [vmem:[#allocation2 + $0x2c] sm:$0xf]
    %v56 = vld [vmem:[#allocation2 + $0x30] sm:$0xf]
    %v57 = vld [vmem:[#allocation2 + $0x34] sm:$0xf]
    %v58 = vld [vmem:[#allocation2 + $0x38] sm:$0xf]
    %v59 = vld [vmem:[#allocation2 + $0x3c] sm:$0xf]
    %v60 = vld [vmem:[#allocation2 + $0x40] sm:$0xf]
    %v61 = vld [vmem:[#allocation2 + $0x44] sm:$0xf]
    %v62 = vld [vmem:[#allocation2 + $0x48] sm:$0xf]
    %v63 = vld [vmem:[#allocation2 + $0x4c] sm:$0xf]
    %v64 = vld [vmem:[#allocation2 + $0x50] sm:$0xf]
    %v65 = vld [vmem:[#allocation2 + $0x54] sm:$0xf]
    %v66 = vld [vmem:[#allocation2 + $0x58] sm:$0xf]
    %v67 = vld [vmem:[#allocation2 + $0x5c] sm:$0xf]
    %v68 = vld [vmem:[#allocation2 + $0x60] sm:$0xf]
    %v69 = vld [vmem:[#allocation2 + $0x64] sm:$0xf]
    %v70 = vld [vmem:[#allocation2 + $0x68] sm:$0xf]
    %v71 = vld [vmem:[#allocation2 + $0x6c] sm:$0xf]
    %v72 = vld [vmem:[#allocation2 + $0x70] sm:$0xf]
    %v73 = vld [vmem:[#allocation2 + $0x74] sm:$0xf]
    %v74 = vld [vmem:[#allocation2 + $0x78] sm:$0xf]
    %v75 = vld [vmem:[#allocation2 + $0x7c] sm:$0xf]
    %v76 = vld [vmem:[#allocation5] sm:$0xf]
    %v77 = vld [vmem:[#allocation5 + $0x4] sm:$0xf]
    %v78 = vld [vmem:[#allocation5 + $0x8] sm:$0xf]
    %v79 = vld [vmem:[#allocation5 + $0xc] sm:$0xf]
    %v80 = vld [vmem:[#allocation5 + $0x10] sm:$0xf]
    %v81 = vld [vmem:[#allocation5 + $0x14] sm:$0xf]
    %v82 = vld [vmem:[#allocation5 + $0x18] sm:$0xf]
    %v83 = vld [vmem:[#allocation5 + $0x1c] sm:$0xf]
    %v84 = vld [vmem:[#allocation5 + $0x20] sm:$0xf]
    %v85 = vld [vmem:[#allocation5 + $0x24] sm:$0xf]
    %v86 = vld [vmem:[#allocation5 + $0x28] sm:$0xf]
    %v87 = vld [vmem:[#allocation5 + $0x2c] sm:$0xf]
    %v88 = vld [vmem:[#allocation5 + $0x30] sm:$0xf]
    %v89 = vld [vmem:[#allocation5 + $0x34] sm:$0xf]
    %v90 = vld [vmem:[#allocation5 + $0x38] sm:$0xf]
    %v91 = vld [vmem:[#allocation5 + $0x3c] sm:$0xf]
    %v124 = vunpack.c.l.b16 %v44
    %v125 = vunpack.c.l.b16 %v45
    %v126 = vunpack.c.l.b16 %v46
    %v127 = vunpack.c.l.b16 %v47
    %v128 = vunpack.c.l.b16 %v48
    %v129 = vunpack.c.l.b16 %v49
    %v130 = vunpack.c.l.b16 %v50
    %v131 = vunpack.c.l.b16 %v51
    %v132 = vunpack.c.l.b16 %v52
    %v133 = vunpack.c.l.b16 %v53
    %v134 = vunpack.c.l.b16 %v54
    %v135 = vunpack.c.l.b16 %v55
    %v136 = vunpack.c.l.b16 %v56
    %v137 = vunpack.c.l.b16 %v57
    %v138 = vunpack.c.l.b16 %v58
    %v139 = vunpack.c.l.b16 %v59
    %v140 = vunpack.c.l.b16 %v60
    %v141 = vunpack.c.l.b16 %v61
    %v142 = vunpack.c.l.b16 %v62
    %v143 = vunpack.c.l.b16 %v63
    %v144 = vunpack.c.l.b16 %v64
    %v145 = vunpack.c.l.b16 %v65
    %v146 = vunpack.c.l.b16 %v66
    %v147 = vunpack.c.l.b16 %v67
    %v148 = vunpack.c.l.b16 %v68
    %v149 = vunpack.c.l.b16 %v69
    %v150 = vunpack.c.l.b16 %v70
    %v151 = vunpack.c.l.b16 %v71
    %v152 = vunpack.c.l.b16 %v72
    %v153 = vunpack.c.l.b16 %v73
    %v154 = vunpack.c.l.b16 %v74
    %v155 = vunpack.c.l.b16 %v75
    %v156 = vpack.c.b16 %v125, %v124
    %v157 = vpack.c.b16 %v127, %v126
    %v158 = vpack.c.b16 %v129, %v128
    %v159 = vpack.c.b16 %v131, %v130
    %v160 = vpack.c.b16 %v133, %v132
    %v161 = vpack.c.b16 %v135, %v134
    %v162 = vpack.c.b16 %v137, %v136
    %v163 = vpack.c.b16 %v139, %v138
    %v164 = vpack.c.b16 %v141, %v140
    %v165 = vpack.c.b16 %v143, %v142
    %v166 = vpack.c.b16 %v145, %v144
    %v167 = vpack.c.b16 %v147, %v146
    %v168 = vpack.c.b16 %v149, %v148
    %v169 = vpack.c.b16 %v151, %v150
    %v170 = vpack.c.b16 %v153, %v152
    %v171 = vpack.c.b16 %v155, %v154
    %v204 = vunpack.c.l.b16 %v76
    %v205 = vunpack.c.l.b16 %v77
    %v206 = vunpack.c.l.b16 %v78
    %v207 = vunpack.c.l.b16 %v79
    %v208 = vunpack.c.l.b16 %v80
    %v209 = vunpack.c.l.b16 %v81
    %v210 = vunpack.c.l.b16 %v82
    %v211 = vunpack.c.l.b16 %v83
    %v212 = vunpack.c.l.b16 %v84
    %v213 = vunpack.c.l.b16 %v85
    %v214 = vunpack.c.l.b16 %v86
    %v215 = vunpack.c.l.b16 %v87
    %v216 = vunpack.c.l.b16 %v88
    %v217 = vunpack.c.l.b16 %v89
    %v218 = vunpack.c.l.b16 %v90
    %v219 = vunpack.c.l.b16 %v91
    %v220 = vpack.c.b16 %v205, %v204
    %v221 = vpack.c.b16 %v207, %v206
    %v222 = vpack.c.b16 %v209, %v208
    %v223 = vpack.c.b16 %v211, %v210
    %v224 = vpack.c.b16 %v213, %v212
    %v225 = vpack.c.b16 %v215, %v214
    %v226 = vpack.c.b16 %v217, %v216
    %v227 = vpack.c.b16 %v219, %v218
    %236 = vmatprep.subr.bf16.mxu0 0
    %237 = vmatpush1.bf16.msra.mxu0 %v227
    %238 = vmatprep.subr.bf16.mxu0 0
    %239 = vmatpush1.bf16.msra.mxu0 %v226
    %240 = vmatprep.subr.bf16.mxu0 0
    %241 = vmatpush1.bf16.msra.mxu0 %v225
    %242 = vmatprep.subr.bf16.mxu0 0
    %243 = vmatpush1.bf16.msra.mxu0 %v224
    %244 = vmatprep.subr.bf16.mxu0 0
    %245 = vmatpush1.bf16.msra.mxu0 %v223
    %246 = vmatprep.subr.bf16.mxu0 0
    %247 = vmatpush1.bf16.msra.mxu0 %v222
    %248 = vmatprep.subr.bf16.mxu0 0
    %249 = vmatpush1.bf16.msra.mxu0 %v221
    %250 = vmatprep.subr.bf16.mxu0 0
    %251 = vmatpush1.bf16.msra.mxu0 %v220
    %252 = vmatprep.subr.bf16.mxu0 0
    %253 = vmatpush2.bf16.msra.mxu0 0
    %254 = vmatprep.subr.bf16.mxu0 0
    %255 = vmatpush2.bf16.msra.mxu0 0
    %256 = vmatprep.subr.bf16.mxu0 0
    %257 = vmatpush2.bf16.msra.mxu0 0
    %258 = vmatprep.subr.bf16.mxu0 0
    %259 = vmatpush2.bf16.msra.mxu0 0
    %260 = vmatprep.subr.bf16.mxu0 0
    %261 = vmatpush2.bf16.msra.mxu0 0
    %262 = vmatprep.subr.bf16.mxu0 0
    %263 = vmatpush2.bf16.msra.mxu0 0
    %264 = vmatprep.subr.bf16.mxu0 0
    %265 = vmatpush2.bf16.msra.mxu0 0
    %266 = vmatprep.subr.bf16.mxu0 0
    %267 = vmatpush2.bf16.msra.mxu0 0
    %268 = vmatprep.mubr.bf16.mxu0 0
    %269 = vmatmul.mubr.bf16.gmra.mxu0 %v156
    %v270 = vpop.f32.mrf.mxu0
    %v271 = vadd.f32 0.0, %v270
    %v272 = vpop.f32.mrf.mxu0
    %v273 = vpop.f32.mrf.mxu0
    %v274 = vadd.f32 0.0, %v273
    %v275 = vpop.f32.mrf.mxu0
    %276 = vmatprep.mubr.bf16.mxu0 0
    %277 = vmatmul.mubr.bf16.gmra.mxu0 %v157
    %v278 = vpop.f32.mrf.mxu0
    %v279 = vadd.f32 0.0, %v278
    %v280 = vpop.f32.mrf.mxu0
    %v281 = vpop.f32.mrf.mxu0
    %v282 = vadd.f32 0.0, %v281
    %v283 = vpop.f32.mrf.mxu0
    %284 = vmatprep.mubr.bf16.mxu0 0
    %285 = vmatmul.mubr.bf16.gmra.mxu0 %v158
    %v286 = vpop.f32.mrf.mxu0
    %v287 = vadd.f32 0.0, %v286
    %v288 = vpop.f32.mrf.mxu0
    %v289 = vpop.f32.mrf.mxu0
    %v290 = vadd.f32 0.0, %v289
    %v291 = vpop.f32.mrf.mxu0
    %292 = vmatprep.mubr.bf16.mxu0 0
    %293 = vmatmul.mubr.bf16.gmra.mxu0 %v159
    %v294 = vpop.f32.mrf.mxu0
    %v295 = vadd.f32 0.0, %v294
    %v296 = vpop.f32.mrf.mxu0
    %v297 = vpop.f32.mrf.mxu0
    %v298 = vadd.f32 0.0, %v297
    %v299 = vpop.f32.mrf.mxu0
    %300 = vmatprep.mubr.bf16.mxu0 0
    %301 = vmatmul.mubr.bf16.gmra.mxu0 %v160
    %v302 = vpop.f32.mrf.mxu0
    %v303 = vadd.f32 0.0, %v302
    %v304 = vpop.f32.mrf.mxu0
    %v305 = vpop.f32.mrf.mxu0
    %v306 = vadd.f32 0.0, %v305
    %v307 = vpop.f32.mrf.mxu0
    %308 = vmatprep.mubr.bf16.mxu0 0
    %309 = vmatmul.mubr.bf16.gmra.mxu0 %v161
    %v310 = vpop.f32.mrf.mxu0
    %v311 = vadd.f32 0.0, %v310
    %v312 = vpop.f32.mrf.mxu0
    %v313 = vpop.f32.mrf.mxu0
    %v314 = vadd.f32 0.0, %v313
    %v315 = vpop.f32.mrf.mxu0
    %316 = vmatprep.mubr.bf16.mxu0 0
    %317 = vmatmul.mubr.bf16.gmra.mxu0 %v162
    %v318 = vpop.f32.mrf.mxu0
    %v319 = vadd.f32 0.0, %v318
    %v320 = vpop.f32.mrf.mxu0
    %v321 = vpop.f32.mrf.mxu0
    %v322 = vadd.f32 0.0, %v321
    %v323 = vpop.f32.mrf.mxu0
    %324 = vmatprep.mubr.bf16.mxu0 0
    %325 = vmatmul.mubr.bf16.gmra.mxu0 %v163
    %v326 = vpop.f32.mrf.mxu0
    %v327 = vadd.f32 0.0, %v326
    %v328 = vpop.f32.mrf.mxu0
    %v329 = vpop.f32.mrf.mxu0
    %v330 = vadd.f32 0.0, %v329
    %v331 = vpop.f32.mrf.mxu0
    %332 = vmatprep.mubr.bf16.mxu0 0
    %333 = vmatmul.mubr.bf16.gmra.mxu0 %v164
    %v334 = vpop.f32.mrf.mxu0
    %v335 = vadd.f32 0.0, %v334
    %v336 = vpop.f32.mrf.mxu0
    %v337 = vpop.f32.mrf.mxu0
    %v338 = vadd.f32 0.0, %v337
    %v339 = vpop.f32.mrf.mxu0
    %340 = vmatprep.mubr.bf16.mxu0 0
    %341 = vmatmul.mubr.bf16.gmra.mxu0 %v165
    %v342 = vpop.f32.mrf.mxu0
    %v343 = vadd.f32 0.0, %v342
    %v344 = vpop.f32.mrf.mxu0
    %v345 = vpop.f32.mrf.mxu0
    %v346 = vadd.f32 0.0, %v345
    %v347 = vpop.f32.mrf.mxu0
    %348 = vmatprep.mubr.bf16.mxu0 0
    %349 = vmatmul.mubr.bf16.gmra.mxu0 %v166
    %v350 = vpop.f32.mrf.mxu0
    %v351 = vadd.f32 0.0, %v350
    %v352 = vpop.f32.mrf.mxu0
    %v353 = vpop.f32.mrf.mxu0
    %v354 = vadd.f32 0.0, %v353
    %v355 = vpop.f32.mrf.mxu0
    %356 = vmatprep.mubr.bf16.mxu0 0
    %357 = vmatmul.mubr.bf16.gmra.mxu0 %v167
    %v358 = vpop.f32.mrf.mxu0
    %v359 = vadd.f32 0.0, %v358
    %v360 = vpop.f32.mrf.mxu0
    %v361 = vpop.f32.mrf.mxu0
    %v362 = vadd.f32 0.0, %v361
    %v363 = vpop.f32.mrf.mxu0
    %364 = vmatprep.mubr.bf16.mxu0 0
    %365 = vmatmul.mubr.bf16.gmra.mxu0 %v168
    %v366 = vpop.f32.mrf.mxu0
    %v367 = vadd.f32 0.0, %v366
    %v368 = vpop.f32.mrf.mxu0
    %v369 = vpop.f32.mrf.mxu0
    %v370 = vadd.f32 0.0, %v369
    %v371 = vpop.f32.mrf.mxu0
    %372 = vmatprep.mubr.bf16.mxu0 0
    %373 = vmatmul.mubr.bf16.gmra.mxu0 %v169
    %v374 = vpop.f32.mrf.mxu0
    %v375 = vadd.f32 0.0, %v374
    %v376 = vpop.f32.mrf.mxu0
    %v377 = vpop.f32.mrf.mxu0
    %v378 = vadd.f32 0.0, %v377
    %v379 = vpop.f32.mrf.mxu0
    %380 = vmatprep.mubr.bf16.mxu0 0
    %381 = vmatmul.mubr.bf16.gmra.mxu0 %v170
    %v382 = vpop.f32.mrf.mxu0
    %v383 = vadd.f32 0.0, %v382
    %v384 = vpop.f32.mrf.mxu0
    %v385 = vpop.f32.mrf.mxu0
    %v386 = vadd.f32 0.0, %v385
    %v387 = vpop.f32.mrf.mxu0
    %388 = vmatprep.mubr.bf16.mxu0 0
    %389 = vmatmul.mubr.bf16.gmra.mxu0 %v171
    %v390 = vpop.f32.mrf.mxu0
    %v391 = vadd.f32 0.0, %v390
    %v392 = vpop.f32.mrf.mxu0
    %v393 = vpop.f32.mrf.mxu0
    %v394 = vadd.f32 0.0, %v393
    %v395 = vpop.f32.mrf.mxu0
    %396 = vdwg.mxu0
    %397 = vst [vmem:[#allocation7] sm:$0xff] %v271
    %398 = vst [vmem:[#allocation7 + $0x8] sm:$0xff] %v274
    %399 = vst [vmem:[#allocation7 + $0x10] sm:$0xff] %v279
    %400 = vst [vmem:[#allocation7 + $0x18] sm:$0xff] %v282
    %401 = vst [vmem:[#allocation7 + $0x20] sm:$0xff] %v287
    %402 = vst [vmem:[#allocation7 + $0x28] sm:$0xff] %v290
    %403 = vst [vmem:[#allocation7 + $0x30] sm:$0xff] %v295
    %404 = vst [vmem:[#allocation7 + $0x38] sm:$0xff] %v298
    %405 = vst [vmem:[#allocation7 + $0x40] sm:$0xff] %v303
    %406 = vst [vmem:[#allocation7 + $0x48] sm:$0xff] %v306
    %407 = vst [vmem:[#allocation7 + $0x50] sm:$0xff] %v311
    %408 = vst [vmem:[#allocation7 + $0x58] sm:$0xff] %v314
    %409 = vst [vmem:[#allocation7 + $0x60] sm:$0xff] %v319
    %410 = vst [vmem:[#allocation7 + $0x68] sm:$0xff] %v322
    %411 = vst [vmem:[#allocation7 + $0x70] sm:$0xff] %v327
    %412 = vst [vmem:[#allocation7 + $0x78] sm:$0xff] %v330
    %413 = vst [vmem:[#allocation7 + $0x80] sm:$0xff] %v335
    %414 = vst [vmem:[#allocation7 + $0x88] sm:$0xff] %v338
    %415 = vst [vmem:[#allocation7 + $0x90] sm:$0xff] %v343
    %416 = vst [vmem:[#allocation7 + $0x98] sm:$0xff] %v346
    %417 = vst [vmem:[#allocation7 + $0xa0] sm:$0xff] %v351
    %418 = vst [vmem:[#allocation7 + $0xa8] sm:$0xff] %v354
    %419 = vst [vmem:[#allocation7 + $0xb0] sm:$0xff] %v359
    %420 = vst [vmem:[#allocation7 + $0xb8] sm:$0xff] %v362
    %421 = vst [vmem:[#allocation7 + $0xc0] sm:$0xff] %v367
    %422 = vst [vmem:[#allocation7 + $0xc8] sm:$0xff] %v370
    %423 = vst [vmem:[#allocation7 + $0xd0] sm:$0xff] %v375
    %424 = vst [vmem:[#allocation7 + $0xd8] sm:$0xff] %v378
    %425 = vst [vmem:[#allocation7 + $0xe0] sm:$0xff] %v383
    %426 = vst [vmem:[#allocation7 + $0xe8] sm:$0xff] %v386
    %427 = vst [vmem:[#allocation7 + $0xf0] sm:$0xff] %v391
    %428 = vst [vmem:[#allocation7 + $0xf8] sm:$0xff] %v394
    %v429 = vadd.f32 %v271, %v274
    %v430 = vadd.f32 %v429, %v279
    %v431 = vadd.f32 %v430, %v282
    %v432 = vadd.f32 %v431, %v287
    %v433 = vadd.f32 %v432, %v290
    %v434 = vadd.f32 %v433, %v295
    %v435 = vadd.f32 %v434, %v298
    %v436 = vadd.f32 %v435, %v303
    %v437 = vadd.f32 %v436, %v306
    %v438 = vadd.f32 %v437, %v311
    %v439 = vadd.f32 %v438, %v314
    %v440 = vadd.f32 %v439, %v319
    %v441 = vadd.f32 %v440, %v322
    %v442 = vadd.f32 %v441, %v327
    %v443 = vadd.f32 %v442, %v330
    %v444 = vadd.f32 %v443, %v335
    %v445 = vadd.f32 %v444, %v338
    %v446 = vadd.f32 %v445, %v343
    %v447 = vadd.f32 %v446, %v346
    %v448 = vadd.f32 %v447, %v351
    %v449 = vadd.f32 %v448, %v354
    %v450 = vadd.f32 %v449, %v359
    %v451 = vadd.f32 %v450, %v362
    %v452 = vadd.f32 %v451, %v367
    %v453 = vadd.f32 %v452, %v370
    %v454 = vadd.f32 %v453, %v375
    %v455 = vadd.f32 %v454, %v378
    %v456 = vadd.f32 %v455, %v383
    %v457 = vadd.f32 %v456, %v386
    %v458 = vadd.f32 %v457, %v391
    %v459 = vadd.f32 %v458, %v394
    %v460 = vrot.slane %v459, 4
    %v461 = vadd.f32 %v459, %v460
    %v462 = vrot.slane %v461, 2
    %v463 = vadd.f32 %v461, %v462
    %v464 = vrot.slane %v463, 1
    %v465 = vadd.f32 %v463, %v464
    %v466 = vmul.f32 %v271, %v271
    %v467 = vmul.f32 %v274, %v274
    %v468 = vmul.f32 %v279, %v279
    %v469 = vmul.f32 %v282, %v282
    %v470 = vmul.f32 %v287, %v287
    %v471 = vmul.f32 %v290, %v290
    %v472 = vmul.f32 %v295, %v295
    %v473 = vmul.f32 %v298, %v298
    %v474 = vmul.f32 %v303, %v303
    %v475 = vmul.f32 %v306, %v306
    %v476 = vmul.f32 %v311, %v311
    %v477 = vmul.f32 %v314, %v314
    %v478 = vmul.f32 %v319, %v319
    %v479 = vmul.f32 %v322, %v322
    %v480 = vmul.f32 %v327, %v327
    %v481 = vmul.f32 %v330, %v330
    %v482 = vmul.f32 %v335, %v335
    %v483 = vmul.f32 %v338, %v338
    %v484 = vmul.f32 %v343, %v343
    %v485 = vmul.f32 %v346, %v346
    %v486 = vmul.f32 %v351, %v351
    %v487 = vmul.f32 %v354, %v354
    %v488 = vmul.f32 %v359, %v359
    %v489 = vmul.f32 %v362, %v362
    %v490 = vmul.f32 %v367, %v367
    %v491 = vmul.f32 %v370, %v370
    %v492 = vmul.f32 %v375, %v375
    %v493 = vmul.f32 %v378, %v378
    %v494 = vmul.f32 %v383, %v383
    %v495 = vmul.f32 %v386, %v386
    %v496 = vmul.f32 %v391, %v391
    %v497 = vmul.f32 %v394, %v394
    %v498 = vadd.f32 %v466, %v467
    %v499 = vadd.f32 %v498, %v468
    %v500 = vadd.f32 %v499, %v469
    %v501 = vadd.f32 %v500, %v470
    %v502 = vadd.f32 %v501, %v471
    %v503 = vadd.f32 %v502, %v472
    %v504 = vadd.f32 %v503, %v473
    %v505 = vadd.f32 %v504, %v474
    %v506 = vadd.f32 %v505, %v475
    %v507 = vadd.f32 %v506, %v476
    %v508 = vadd.f32 %v507, %v477
    %v509 = vadd.f32 %v508, %v478
    %v510 = vadd.f32 %v509, %v479
    %v511 = vadd.f32 %v510, %v480
    %v512 = vadd.f32 %v511, %v481
    %v513 = vadd.f32 %v512, %v482
    %v514 = vadd.f32 %v513, %v483
    %v515 = vadd.f32 %v514, %v484
    %v516 = vadd.f32 %v515, %v485
    %v517 = vadd.f32 %v516, %v486
    %v518 = vadd.f32 %v517, %v487
    %v519 = vadd.f32 %v518, %v488
    %v520 = vadd.f32 %v519, %v489
    %v521 = vadd.f32 %v520, %v490
    %v522 = vadd.f32 %v521, %v491
    %v523 = vadd.f32 %v522, %v492
    %v524 = vadd.f32 %v523, %v493
    %v525 = vadd.f32 %v524, %v494
    %v526 = vadd.f32 %v525, %v495
    %v527 = vadd.f32 %v526, %v496
    %v528 = vadd.f32 %v527, %v497
    %v529 = vrot.slane %v528, 4
    %v530 = vadd.f32 %v528, %v529
    %v531 = vrot.slane %v530, 2
    %v532 = vadd.f32 %v530, %v531
    %v533 = vrot.slane %v532, 1
    %v534 = vadd.f32 %v532, %v533
    %v535 = vlaneseq
    %v536 = vshrl.u32 %v535, 7
    %vm537 = vcmp.eq.s32.totalorder %v536, 0
    %vm538 = vcmp.eq.s32.totalorder %v536, 1
    %v539 = vsel %vm538, %v534, 0.0
    %v540 = vsel %vm537, %v465, %v539
    %541 = vst [vmem:[#allocation8] sm:$0xff] %v540
    // Predicated region
    $region18: #{tpu_custom_call.1} parent=1 // pred_check
      _
    $region19: #{tpu_custom_call.1} parent=1 // pred_check_branch
      %543 = sbr.rel (0) target = $region21
    $region20: #{tpu_custom_call.1} parent=1 // pred_region
      %s545 = ssub.s32 4096, 4096
      %546 = vsyncadd [#allocation4], %s545
      %s547 = sshll.u32 [#allocation7], 4
      %s548 = int_to_ptr.vmem [resolvable:$true] %s547
      %553 = dma.vmem_to_hbm [thread:$0]  %s548, 4096, %s2, [#allocation4], 128, 128, 8
    $region21: #{tpu_custom_call.1} parent=1 // pred_fallthru
      _
    // Predicated region
    $region22: #{tpu_custom_call.1} parent=1 // pred_check
      _
    $region23: #{tpu_custom_call.1} parent=1 // pred_check_branch
      %555 = sbr.rel (0) target = $region25
    $region24: #{tpu_custom_call.1} parent=1 // pred_region
      %s557 = ssub.s32 128, 128
      %558 = vsyncadd [#allocation9], %s557
      %s560 = sshll.u32 [#allocation8], 4
      %s561 = int_to_ptr.vmem [resolvable:$true] %s560
      %563 = dma.vmem_to_hbm [thread:$0]  %s561, 128, %s3, [#allocation9]
    $region25: #{tpu_custom_call.1} parent=1 // pred_fallthru
      _
    // Predicated region
    $region26: #{tpu_custom_call.1} parent=1 // pred_check
      _
    $region27: #{tpu_custom_call.1} parent=1 // pred_check_branch
      %565 = sbr.rel (0) target = $region29
    $region28: #{tpu_custom_call.1} parent=1 // pred_region
      %566 = dma.done [#allocation4], 4096
    $region29: #{tpu_custom_call.1} parent=1 // pred_fallthru
      _
    // Predicated region
    $region30: #{tpu_custom_call.1} parent=1 // pred_check
      _
    $region31: #{tpu_custom_call.1} parent=1 // pred_check_branch
      %568 = sbr.rel (0) target = $region33
    $region32: #{tpu_custom_call.1} parent=1 // pred_region
      %569 = dma.done [#allocation9], 128
    $region33: #{tpu_custom_call.1} parent=1 // pred_fallthru
      _
    %570 = vsyncpa [#allocation3], 1
    %571 = vsyncpa [#allocation6], 1
    %572 = vsyncpa [#allocation4], 1
    %573 = vsyncpa [#allocation9], 1

</llo_original>
